<compile_context>
chip_gen: v7x
topology: tpu7x:2x2x1
jax: 0.10.0
libtpu: 0.0.40
codegen_flags: <defaults>
</compile_context>

<pallas_src>
import jax
import jax.numpy as jnp
from jax.experimental import pallas as pl
from jax.experimental.pallas import tpu as pltpu


def _rf_kernel(x_ref, kern_ref, wkv_ref, bkv_ref, selm_ref, amap_ref, out_ref):
    # x_ref:    (1, Cin, TL)   channel-first video slab (spatial on lanes)
    # kern_ref: (1, A, 1)      per-batch text kernel column (precomputed in wrapper)
    # wkv_ref:  (2A, Cin)      fused k/v 1x1-conv weight (PyTorch layout), bkv_ref: (2A, 1)
    # selm_ref: (A+1, A)       rows 0..A-1: block-diag group selector; row A: 1/G mean row
    # amap_ref: (1, 1, TL)     out_ref: (1, A, TL)
    A = out_ref.shape[1]
    x = x_ref[0]                                                                  # (Cin, TL)

    # Fused 1x1 conv: one (2A, Cin) @ (Cin, TL) MXU matmul gives k and v stacked.
    kv = jnp.dot(wkv_ref[...], x, preferred_element_type=jnp.float32) + bkv_ref[...]  # (2A, TL)
    prod = kv[:A, :] * kern_ref[0]                                                # (A, TL) k * kern
    v = kv[A:, :]                                                                 # (A, TL)

    # Single MXU matmul fuses: per-group attention sum broadcast back to channels
    # (rows 0..A-1) and the group mean for active_map (row A, 1/G folded in).
    comb = jnp.dot(selm_ref[...], prod, preferred_element_type=jnp.float32)       # (A+1, TL)
    amap_ref[0] = comb[A:, :]                                                     # (1, TL)
    out_ref[0] = (v * jax.nn.sigmoid(comb[:A, :])).astype(out_ref.dtype)
    # TODO(synk): optional `masks` multiplication path not implemented (masks=None default).


def _pick_spatial_tile(L, cin, a, out_itemsize=4,
                       budget_bytes=20 * 1024 * 1024, max_tile=16 * 1024):
    """Largest multiple-of-128 spatial tile whose double-buffered streamed blocks
    (x, out, active_map) plus in-kernel f32 intermediates fit the VMEM budget.
    Prefers an exact divisor of L when one exists within 2x (avoids a masked tail)."""
    lanes = 128
    l_rounded = -(-L // lanes) * lanes
    cap = max(lanes, min(max_tile, l_rounded))

    def fits(t):
        streamed = 2 * t * (cin * 4 + a * out_itemsize + 4)   # x/out/amap, 2 pipeline buffers
        interm = t * (5 * a + 1) * 4                          # kv, prod, comb, sigmoid/out (f32)
        return streamed + interm <= budget_bytes

    tl = cap
    while tl > lanes and not fits(tl):
        tl -= lanes

    if L % tl != 0:
        best_div, c = None, lanes
        while c <= tl:
            if L % c == 0:
                best_div = c
            c += lanes
        if best_div is not None and 2 * best_div >= tl:
            tl = best_div                                     # divisor is close enough -> no tail
    return tl


def relevance_filter_2d(video_nchw, text, wkv, bkv, wt, bt, groups, *,
                        tl=None, out_dtype=jnp.float32, x_buffers=2):
    """RelevanceFilter forward, phase='2D', kernelsize=(1,1), masks=None.

    video_nchw: (B, Cin, H, W); text: (B, T).
    wkv: (2A, Cin)  Conv2d(Cin, 2A, 1) weight (squeezed);  bkv: (2A,)
    wt:  (A, T)     Linear(T, A) weight (PyTorch out,in);  bt:  (A,)
    Returns (active_map (B, 1, H, W) f32, out (B, A, H, W) out_dtype).
    """
    B, Cin, H, W = video_nchw.shape
    A2 = wkv.shape[0]
    A = A2 // 2
    G = groups
    C = A // G
    L = H * W

    out_itemsize = jnp.dtype(out_dtype).itemsize
    if tl is None:
        tl = _pick_spatial_tile(L, Cin, A, out_itemsize=out_itemsize)
    n_l = -(-L // tl)   # cdiv: last block (if partial) is masked by Pallas

    # Free layout plumbing: flatten spatial dims of NCHW (no transpose, no HBM round trip).
    x = video_nchw.reshape(B, Cin, L)
    # Hoisted, spatial-invariant text kernel: (B, A, 1) column streamed once per batch.
    kern = (text @ wt.T + bt).astype(jnp.float32).reshape(B, A, 1)
    wkv_f = wkv.astype(jnp.float32)
    bkv_c = bkv.astype(jnp.float32).reshape(A2, 1)

    # Group structure + mean as ONE small dense constant so both the grouped reduction and
    # its channel broadcast stay on the MXU (no reshape/repeat through the XLU).
    idx = jnp.arange(A)
    sel = (idx[:, None] // C == idx[None, :] // C).astype(jnp.float32)   # (A, A) block-diag
    mean_row = jnp.full((1, A), 1.0 / G, dtype=jnp.float32)              # group-mean row
    selm = jnp.concatenate([sel, mean_row], axis=0)                      # (A+1, A)

    x_spec_kwargs = {}
    if x_buffers != 2:  # optional deeper buffering if DMA is exposed (review suggestion)
        x_spec_kwargs["pipeline_mode"] = pl.Buffered(x_buffers)

    grid_spec = pltpu.PrefetchScalarGridSpec(
        num_scalar_prefetch=0,
        grid=(B, n_l),
        in_specs=[
            pl.BlockSpec((1, Cin, tl), lambda b, l: (b, 0, l), **x_spec_kwargs),  # video slab
            pl.BlockSpec((1, A, 1), lambda b, l: (b, 0, 0)),       # per-batch text kernel
            pl.BlockSpec((A2, Cin), lambda b, l: (0, 0)),          # fused Wkv weight
            pl.BlockSpec((A2, 1), lambda b, l: (0, 0)),            # fused Wkv bias
            pl.BlockSpec((A + 1, A), lambda b, l: (0, 0)),         # selector + mean matrix
        ],
        out_specs=[
            pl.BlockSpec((1, 1, tl), lambda b, l: (b, 0, l)),      # active_map (lane-dense)
            pl.BlockSpec((1, A, tl), lambda b, l: (b, 0, l)),      # out (lane-dense)
        ],
    )

    amap_bl, out_bl = pl.pallas_call(
        _rf_kernel,
        out_shape=(
            jax.ShapeDtypeStruct((B, 1, L), jnp.float32),
            jax.ShapeDtypeStruct((B, A, L), out_dtype),
        ),
        grid_spec=grid_spec,
        compiler_params=pltpu.CompilerParams(
            dimension_semantics=("parallel", "parallel"),
            vmem_limit_bytes=32 * 1024 * 1024,   # >= default on all gens; 20 MiB tile budget fits
        ),
    )(x, kern, wkv_f, bkv_c, selm)

    # Free reshapes back to the PyTorch NCHW convention.
    return amap_bl.reshape(B, 1, H, W), out_bl.reshape(B, A, H, W)


def _reference(video_nchw, text, wkv, bkv, wt, bt, groups):
    """Pure-JAX reference mirroring the PyTorch forward (phase='2D', k=(1,1), masks=None)."""
    B, Cin, H, W = video_nchw.shape
    A = wkv.shape[0] // 2
    G = groups
    C = A // G
    x = jnp.transpose(video_nchw, (0, 2, 3, 1))                  # (B,H,W,Cin)
    kv = x @ wkv.T + bkv                                         # (B,H,W,2A)
    k, v = kv[..., :A], kv[..., A:]
    kern = text @ wt.T + bt                                      # (B,A)
    att = (k.reshape(B, H, W, G, C) * kern.reshape(B, 1, 1, G, C)).sum(-1)   # (B,H,W,G)
    amap = att.mean(-1, keepdims=True)                           # (B,H,W,1)
    out = (v.reshape(B, H, W, G, C) * jax.nn.sigmoid(att)[..., None]).reshape(B, H, W, A)
    return jnp.transpose(amap, (0, 3, 1, 2)), jnp.transpose(out, (0, 3, 1, 2))


if __name__ == "__main__":
    # Small shapes consistent with the module (phase='2D', kernelsize=(1,1)):
    B, Cin, T, A, G = 2, 16, 32, 32, 8    # video_fea_dim=16, text_fea_dim=32, attention_dim=32

    key = jax.random.PRNGKey(0)
    ks = jax.random.split(key, 7)
    text = jax.random.normal(ks[1], (B, T), dtype=jnp.float32)
    wkv = 0.1 * jax.random.normal(ks[2], (2 * A, Cin), dtype=jnp.float32)
    bkv = 0.1 * jax.random.normal(ks[3], (2 * A,), dtype=jnp.float32)
    wt = 0.1 * jax.random.normal(ks[4], (A, T), dtype=jnp.float32)
    bt = 0.1 * jax.random.normal(ks[5], (A,), dtype=jnp.float32)

    # 1) 16x16 frame, auto tile (picker takes the whole frame per grid step), f32 parity.
    video = jax.random.normal(ks[0], (B, Cin, 16, 16), dtype=jnp.float32)
    amap, out = relevance_filter_2d(video, text, wkv, bkv, wt, bt, G)
    jax.block_until_ready((amap, out))
    amap_r, out_r = _reference(video, text, wkv, bkv, wt, bt, G)
    assert amap.shape == (B, 1, 16, 16) and out.shape == (B, A, 16, 16)
    assert jnp.allclose(amap, amap_r, atol=1e-4, rtol=1e-4)
    assert jnp.allclose(out, out_r, atol=1e-4, rtol=1e-4)

    # 2) Non-divisible spatial extent (H*W = 192 with tl=128): exercises the cdiv tail mask.
    video2 = jax.random.normal(ks[6], (B, Cin, 16, 12), dtype=jnp.float32)
    amap2, out2 = relevance_filter_2d(video2, text, wkv, bkv, wt, bt, G, tl=128)
    jax.block_until_ready((amap2, out2))
    amap2_r, out2_r = _reference(video2, text, wkv, bkv, wt, bt, G)
    assert jnp.allclose(amap2, amap2_r, atol=1e-4, rtol=1e-4)
    assert jnp.allclose(out2, out2_r, atol=1e-4, rtol=1e-4)

    # 3) bf16 output store (the dominant HBM stream): compute stays f32, active_map stays f32.
    amap3, out3 = relevance_filter_2d(video, text, wkv, bkv, wt, bt, G, out_dtype=jnp.bfloat16)
    jax.block_until_ready((amap3, out3))
    assert out3.dtype == jnp.bfloat16
    assert jnp.allclose(amap3, amap_r, atol=1e-4, rtol=1e-4)
    assert jnp.allclose(out3.astype(jnp.float32), out_r, atol=3e-2, rtol=3e-2)

    print("KERNEL_OK")
</pallas_src>

<mosaic_0001>
module attributes {stable_mosaic.version = 11 : i64} {
  func.func @_rf_kernel(%arg0: i32, %arg1: i32, %arg2: memref<1x16x256xf32, #tpu.memory_space<vmem>>, %arg3: memref<1x32x1xf32, #tpu.memory_space<vmem>>, %arg4: memref<64x16xf32, #tpu.memory_space<vmem>>, %arg5: memref<64x1xf32, #tpu.memory_space<vmem>>, %arg6: memref<33x32xf32, #tpu.memory_space<vmem>>, %arg7: memref<1x1x256xf32, #tpu.memory_space<vmem>>, %arg8: memref<1x32x256xf32, #tpu.memory_space<vmem>>) attributes {dimension_semantics = [#tpu.dimension_semantics<parallel>, #tpu.dimension_semantics<parallel>], iteration_bounds = array<i64: 2, 1>, scalar_prefetch = 0 : i64, scratch_operands = 0 : i64, tpu.core_type = #tpu.core_type<tc>, window_params = [{transform_indices = @transform_0, window_bounds = array<i64: 1, 16, 256>}, {transform_indices = @transform_1, window_bounds = array<i64: 1, 32, 1>}, {pipeline_mode = #tpu.pipeline_mode<synchronous>, transform_indices = @transform_2, window_bounds = array<i64: 64, 16>}, {pipeline_mode = #tpu.pipeline_mode<synchronous>, transform_indices = @transform_3, window_bounds = array<i64: 64, 1>}, {pipeline_mode = #tpu.pipeline_mode<synchronous>, transform_indices = @transform_4, window_bounds = array<i64: 33, 32>}, {transform_indices = @transform_5, window_bounds = array<i64: 1, 1, 256>}, {transform_indices = @transform_6, window_bounds = array<i64: 1, 32, 256>}]} {
    %c0 = arith.constant 0 : index
    %c0_0 = arith.constant 0 : index
    %c0_1 = arith.constant 0 : index
    %0 = vector.load %arg2[%c0, %c0_0, %c0_1] : memref<1x16x256xf32, #tpu.memory_space<vmem>>, vector<1x16x256xf32>
    %1 = vector.shape_cast %0 : vector<1x16x256xf32> to vector<16x256xf32>
    %c0_2 = arith.constant 0 : index
    %c0_3 = arith.constant 0 : index
    %2 = vector.load %arg4[%c0_2, %c0_3] : memref<64x16xf32, #tpu.memory_space<vmem>>, vector<64x16xf32>
    %cst = arith.constant dense<0.000000e+00> : vector<64x256xf32>
    %3 = tpu.matmul %2, %1, %cst {dimension_numbers = #tpu.dot_dimension_numbers<[1], [0], [0], [1], [0, 0, 1, 1], [], []>} : vector<64x16xf32>, vector<16x256xf32>, vector<64x256xf32> -> vector<64x256xf32>
    %c0_4 = arith.constant 0 : index
    %c0_5 = arith.constant 0 : index
    %4 = vector.load %arg5[%c0_4, %c0_5] : memref<64x1xf32, #tpu.memory_space<vmem>>, vector<64x1xf32>
    %5 = vector.broadcast %4 : vector<64x1xf32> to vector<64x256xf32>
    %6 = arith.addf %3, %5 : vector<64x256xf32>
    %7 = vector.extract_strided_slice %6 {offsets = [0, 0], sizes = [32, 256], strides = [1, 1]} : vector<64x256xf32> to vector<32x256xf32>
    %c0_6 = arith.constant 0 : index
    %c0_7 = arith.constant 0 : index
    %c0_8 = arith.constant 0 : index
    %8 = vector.load %arg3[%c0_6, %c0_7, %c0_8] : memref<1x32x1xf32, #tpu.memory_space<vmem>>, vector<1x32x1xf32>
    %9 = vector.shape_cast %8 : vector<1x32x1xf32> to vector<32x1xf32>
    %10 = vector.broadcast %9 : vector<32x1xf32> to vector<32x256xf32>
    %11 = arith.mulf %7, %10 : vector<32x256xf32>
    %12 = vector.extract_strided_slice %6 {offsets = [32, 0], sizes = [32, 256], strides = [1, 1]} : vector<64x256xf32> to vector<32x256xf32>
    %c0_9 = arith.constant 0 : index
    %c0_10 = arith.constant 0 : index
    %13 = vector.load %arg6[%c0_9, %c0_10] : memref<33x32xf32, #tpu.memory_space<vmem>>, vector<33x32xf32>
    %cst_11 = arith.constant dense<0.000000e+00> : vector<33x256xf32>
    %14 = tpu.matmul %13, %11, %cst_11 {dimension_numbers = #tpu.dot_dimension_numbers<[1], [0], [0], [1], [0, 0, 1, 1], [], []>} : vector<33x32xf32>, vector<32x256xf32>, vector<33x256xf32> -> vector<33x256xf32>
    %15 = vector.extract_strided_slice %14 {offsets = [32, 0], sizes = [1, 256], strides = [1, 1]} : vector<33x256xf32> to vector<1x256xf32>
    %c0_12 = arith.constant 0 : index
    %c0_13 = arith.constant 0 : index
    %c0_14 = arith.constant 0 : index
    %16 = vector.load %arg7[%c0_12, %c0_13, %c0_14] : memref<1x1x256xf32, #tpu.memory_space<vmem>>, vector<1x1x256xf32>
    %17 = vector.shape_cast %16 : vector<1x1x256xf32> to vector<1x256xf32>
    %18 = vector.shape_cast %15 : vector<1x256xf32> to vector<1x1x256xf32>
    tpu.vector_store %arg7[%c0_12, %c0_13, %c0_14], %18 {strides = array<i32>} : memref<1x1x256xf32, #tpu.memory_space<vmem>>, vector<1x1x256xf32>,
    %19 = vector.extract_strided_slice %14 {offsets = [0, 0], sizes = [32, 256], strides = [1, 1]} : vector<33x256xf32> to vector<32x256xf32>
    %20 = arith.negf %19 : vector<32x256xf32>
    %21 = math.exp %20 : vector<32x256xf32>
    %cst_15 = arith.constant 1.000000e+00 : f32
    %22 = vector.broadcast %cst_15 : f32 to vector<32x256xf32>
    %23 = arith.addf %22, %21 : vector<32x256xf32>
    %24 = arith.divf %22, %23 : vector<32x256xf32>
    %25 = arith.mulf %12, %24 : vector<32x256xf32>
    %c0_16 = arith.constant 0 : index
    %c0_17 = arith.constant 0 : index
    %c0_18 = arith.constant 0 : index
    %26 = vector.load %arg8[%c0_16, %c0_17, %c0_18] : memref<1x32x256xf32, #tpu.memory_space<vmem>>, vector<1x32x256xf32>
    %27 = vector.shape_cast %26 : vector<1x32x256xf32> to vector<32x256xf32>
    %28 = vector.shape_cast %25 : vector<32x256xf32> to vector<1x32x256xf32>
    tpu.vector_store %arg8[%c0_16, %c0_17, %c0_18], %28 {strides = array<i32>} : memref<1x32x256xf32, #tpu.memory_space<vmem>>, vector<1x32x256xf32>,
    return
  }
  func.func @transform_0(%arg0: i32, %arg1: i32) -> (i32, i32, i32) {
    %c0_i32 = arith.constant 0 : i32
    %c0_i32_0 = arith.constant 0 : i32
    return %arg0, %c0_i32, %arg1 : i32, i32, i32
  }
  func.func @transform_1(%arg0: i32, %arg1: i32) -> (i32, i32, i32) {
    %c0_i32 = arith.constant 0 : i32
    %c0_i32_0 = arith.constant 0 : i32
    %c0_i32_1 = arith.constant 0 : i32
    return %arg0, %c0_i32, %c0_i32_0 : i32, i32, i32
  }
  func.func @transform_2(%arg0: i32, %arg1: i32) -> (i32, i32) {
    %c0_i32 = arith.constant 0 : i32
    %c0_i32_0 = arith.constant 0 : i32
    %c0_i32_1 = arith.constant 0 : i32
    return %c0_i32, %c0_i32_0 : i32, i32
  }
  func.func @transform_3(%arg0: i32, %arg1: i32) -> (i32, i32) {
    %c0_i32 = arith.constant 0 : i32
    %c0_i32_0 = arith.constant 0 : i32
    %c0_i32_1 = arith.constant 0 : i32
    return %c0_i32, %c0_i32_0 : i32, i32
  }
  func.func @transform_4(%arg0: i32, %arg1: i32) -> (i32, i32) {
    %c0_i32 = arith.constant 0 : i32
    %c0_i32_0 = arith.constant 0 : i32
    %c0_i32_1 = arith.constant 0 : i32
    return %c0_i32, %c0_i32_0 : i32, i32
  }
  func.func @transform_5(%arg0: i32, %arg1: i32) -> (i32, i32, i32) {
    %c0_i32 = arith.constant 0 : i32
    %c0_i32_0 = arith.constant 0 : i32
    return %arg0, %c0_i32, %arg1 : i32, i32, i32
  }
  func.func @transform_6(%arg0: i32, %arg1: i32) -> (i32, i32, i32) {
    %c0_i32 = arith.constant 0 : i32
    %c0_i32_0 = arith.constant 0 : i32
    return %arg0, %c0_i32, %arg1 : i32, i32, i32
  }
}

</mosaic_0001>

<llo_original>
// kernel: tpu_custom_call.1
$region0: #{tpu_custom_call.1}
  #allocation0 [shape = 'u32[]', space=smem, size = 0x4, offset = 0x4, fixed_abs, tag = 'smem constant byte address 0x4 - core index']
  #allocation1 [shape = 'u32[144,128]{1,0:T(1,128)}', space=vmem, size = 0x12000, scoped, tag = 'internal scratch']
  %s0 = inlined_call_operand.vmem [shape: f32[2,16,256], index: 0, kind: input, shape index: {}]
  %s1 = inlined_call_operand.vmem [shape: f32[2,32,1], index: 1, kind: input, shape index: {}]
  %s2 = inlined_call_operand.vmem [shape: f32[64,16], index: 2, kind: input, shape index: {}]
  %s3 = inlined_call_operand.vmem [shape: f32[64,1], index: 3, kind: input, shape index: {}]
  %s4 = inlined_call_operand.vmem [shape: f32[33,32], index: 4, kind: input, shape index: {}]
  %s5 = inlined_call_operand.hbm [shape: f32[2,1,256], index: 5, kind: output, shape index: {0}]
  %s6 = inlined_call_operand.hbm [shape: f32[2,32,256], index: 6, kind: output, shape index: {1}]
  %7 = xla_tuple %s5, %s6
  %s8 = sld [smem:[#allocation0]]
  $region61: #{tpu_custom_call.1} parent=0
    _
  %s10 = ssub.s32 1, %s8
  %s11 = scalar_select 0, %s10, %s8
  $region1: #{tpu_custom_call.1} parent=0
    #allocation2 [shape = 'u8[2048]{0}', space=vmem, size = 0x800, scoped, tag = 'output window, operand 0']
    #allocation3 [shape = 's32[2]{0}', space=sflag, size = 0x8, scoped, tag = 'scoped memory for tpu_custom_call.1']
    #allocation4 [shape = 'u8[65536]{0}', space=vmem, size = 0x10000, scoped, tag = 'output window, operand 1']
    #allocation5 [shape = 's32[2]{0}', space=sflag, size = 0x8, scoped, tag = 'scoped memory for tpu_custom_call.1']
    %12 = vsyncpa [#allocation3], 0
    %s13 = scalar_lea.sflag [#allocation3], 1
    %14 = vsyncpa %s13, 0
    %15 = vsyncpa [#allocation5], 0
    %s16 = scalar_lea.sflag [#allocation5], 1
    %17 = vsyncpa %s16, 0
    loop: start=0, step=1, limit=4
    $region2: #{tpu_custom_call.1} parent=1 // loop_pre_header
      _
    $region3: #{tpu_custom_call.1} parent=1 // loop_header
      %s19 = sphi 0, %s23
      %p20 = scmp.ge.s32.totalorder %s19, 4
      %s26 = sphi 0, %s38
      %s27 = sphi 0, %s34
      %s28 = sphi 0, %s26
      %s29 = sphi 0, %s27
      %s30 = sphi 0, %s28
      %s31 = sphi 0, %s29
      %s43 = sphi 0, %s45
      %s46 = sphi 0, %s43
      %s47 = sphi 0, %s46
      %s63 = sphi 0, %s47
      %s69 = sphi 0, %s71
      %s72 = sphi 0, %s69
      %s73 = sphi 0, %s72
      %s89 = sphi 0, %s73
      %s93 = sphi 0, %s93
      %s95 = sphi 0, %s93
      %s96 = sphi 0, %s95
      %s110 = sphi 0, %s96
      %s114 = sphi 0, %s114
      %s116 = sphi 0, %s114
      %s117 = sphi 0, %s116
      %s131 = sphi 0, %s117
      %s135 = sphi 0, %s135
      %s137 = sphi 0, %s135
      %s138 = sphi 0, %s137
      %s152 = sphi 0, %s138
      %s160 = sphi 0, %s162
      %s163 = sphi 0, %s160
      %s164 = sphi 0, %s163
      %s180 = sphi 0, %s164
      %s188 = sphi 0, %s190
      %s191 = sphi 0, %s188
      %s192 = sphi 0, %s191
      %s208 = sphi 0, %s192
    $region4: #{tpu_custom_call.1} parent=1 // loop_header_branch
      %22 = sbr.rel (%p20) target = $region8
    $region5: #{tpu_custom_call.1} parent=1 // loop_body
      %s24 = ssub.s32 %s19, 1
      %s25 = ssub.s32 %s19, 2
      %s32 = sadd.s32 1, %s27
      %p33 = scmp.ge.s32.totalorder %s32, 1
      %s34 = scalar_select %p33, 0, %s32
      %s35 = sadd.s32 1, %s26
      %s36 = scalar_select %p33, %s35, %s26
      %p37 = scmp.ge.s32.totalorder %s36, 2
      %s38 = scalar_select %p37, 0, %s36
      %s39 = ssub.s32 %s26, %s38
      %s40 = ssub.s32 %s27, %s34
      %s41 = sor.u32 %s39, %s40
      %p42 = scmp.eq.s32.totalorder %s41, 0
      %s44 = sadd.s32 %s43, 1
      %s45 = scalar_select %p42, %s43, %s44
      %p48 = pneg %p42
      %p49 = scmp.eq.s32.totalorder %s19, 1
      %p50 = por %p48, %p49
      %p51 = scmp.ne.s32.totalorder %s43, %s46
      %p52 = scmp.eq.s32.totalorder %s19, 0
      %p53 = por %p51, %p52
      %p54 = scmp.ne.s32.totalorder %s43, %s46
      %p55 = scmp.eq.s32.totalorder %s24, 1
      %p56 = por %p54, %p55
      %p57 = scmp.ne.s32.totalorder %s46, %s47
      %p58 = scmp.eq.s32.totalorder %s24, 0
      %p59 = por %p57, %p58
      %p60 = scmp.ne.s32.totalorder %s46, %s47
      %p61 = scmp.eq.s32.totalorder %s25, 1
      %p62 = por %p60, %p61
      %p64 = scmp.ne.s32.totalorder %s47, %s63
      %p65 = scmp.eq.s32.totalorder %s25, 0
      %p66 = por %p64, %p65
      %s67 = ssub.s32 %s26, %s38
      %p68 = scmp.eq.s32.totalorder %s67, 0
      %s70 = sadd.s32 %s69, 1
      %s71 = scalar_select %p68, %s69, %s70
      %p74 = pneg %p68
      %p75 = scmp.eq.s32.totalorder %s19, 1
      %p76 = por %p74, %p75
      %p77 = scmp.ne.s32.totalorder %s69, %s72
      %p78 = scmp.eq.s32.totalorder %s19, 0
      %p79 = por %p77, %p78
      %p80 = scmp.ne.s32.totalorder %s69, %s72
      %p81 = scmp.eq.s32.totalorder %s24, 1
      %p82 = por %p80, %p81
      %p83 = scmp.ne.s32.totalorder %s72, %s73
      %p84 = scmp.eq.s32.totalorder %s24, 0
      %p85 = por %p83, %p84
      %p86 = scmp.ne.s32.totalorder %s72, %s73
      %p87 = scmp.eq.s32.totalorder %s25, 1
      %p88 = por %p86, %p87
      %p90 = scmp.ne.s32.totalorder %s73, %s89
      %p91 = scmp.eq.s32.totalorder %s25, 0
      %p92 = por %p90, %p91
      %s94 = sadd.s32 %s93, 1
      %p97 = scmp.eq.s32.totalorder %s19, 1
      %p98 = scmp.ne.s32.totalorder %s93, %s95
      %p99 = scmp.eq.s32.totalorder %s19, 0
      %p100 = por %p98, %p99
      %p101 = scmp.ne.s32.totalorder %s93, %s95
      %p102 = scmp.eq.s32.totalorder %s24, 1
      %p103 = por %p101, %p102
      %p104 = scmp.ne.s32.totalorder %s95, %s96
      %p105 = scmp.eq.s32.totalorder %s24, 0
      %p106 = por %p104, %p105
      %p107 = scmp.ne.s32.totalorder %s95, %s96
      %p108 = scmp.eq.s32.totalorder %s25, 1
      %p109 = por %p107, %p108
      %p111 = scmp.ne.s32.totalorder %s96, %s110
      %p112 = scmp.eq.s32.totalorder %s25, 0
      %p113 = por %p111, %p112
      %s115 = sadd.s32 %s114, 1
      %p118 = scmp.eq.s32.totalorder %s19, 1
      %p119 = scmp.ne.s32.totalorder %s114, %s116
      %p120 = scmp.eq.s32.totalorder %s19, 0
      %p121 = por %p119, %p120
      %p122 = scmp.ne.s32.totalorder %s114, %s116
      %p123 = scmp.eq.s32.totalorder %s24, 1
      %p124 = por %p122, %p123
      %p125 = scmp.ne.s32.totalorder %s116, %s117
      %p126 = scmp.eq.s32.totalorder %s24, 0
      %p127 = por %p125, %p126
      %p128 = scmp.ne.s32.totalorder %s116, %s117
      %p129 = scmp.eq.s32.totalorder %s25, 1
      %p130 = por %p128, %p129
      %p132 = scmp.ne.s32.totalorder %s117, %s131
      %p133 = scmp.eq.s32.totalorder %s25, 0
      %p134 = por %p132, %p133
      %s136 = sadd.s32 %s135, 1
      %p139 = scmp.eq.s32.totalorder %s19, 1
      %p140 = scmp.ne.s32.totalorder %s135, %s137
      %p141 = scmp.eq.s32.totalorder %s19, 0
      %p142 = por %p140, %p141
      %p143 = scmp.ne.s32.totalorder %s135, %s137
      %p144 = scmp.eq.s32.totalorder %s24, 1
      %p145 = por %p143, %p144
      %p146 = scmp.ne.s32.totalorder %s137, %s138
      %p147 = scmp.eq.s32.totalorder %s24, 0
      %p148 = por %p146, %p147
      %p149 = scmp.ne.s32.totalorder %s137, %s138
      %p150 = scmp.eq.s32.totalorder %s25, 1
      %p151 = por %p149, %p150
      %p153 = scmp.ne.s32.totalorder %s138, %s152
      %p154 = scmp.eq.s32.totalorder %s25, 0
      %p155 = por %p153, %p154
      %s156 = ssub.s32 %s26, %s38
      %s157 = ssub.s32 %s27, %s34
      %s158 = sor.u32 %s156, %s157
      %p159 = scmp.eq.s32.totalorder %s158, 0
      %s161 = sadd.s32 %s160, 1
      %s162 = scalar_select %p159, %s160, %s161
      %p165 = pneg %p159
      %p166 = scmp.eq.s32.totalorder %s19, 1
      %p167 = por %p165, %p166
      %p168 = scmp.ne.s32.totalorder %s160, %s163
      %p169 = scmp.eq.s32.totalorder %s19, 0
      %p170 = por %p168, %p169
      %p171 = scmp.ne.s32.totalorder %s160, %s163
      %p172 = scmp.eq.s32.totalorder %s24, 1
      %p173 = por %p171, %p172
      %p174 = scmp.ne.s32.totalorder %s163, %s164
      %p175 = scmp.eq.s32.totalorder %s24, 0
      %p176 = por %p174, %p175
      %p177 = scmp.ne.s32.totalorder %s163, %s164
      %p178 = scmp.eq.s32.totalorder %s25, 1
      %p179 = por %p177, %p178
      %p181 = scmp.ne.s32.totalorder %s164, %s180
      %p182 = scmp.eq.s32.totalorder %s25, 0
      %p183 = por %p181, %p182
      %s184 = ssub.s32 %s26, %s38
      %s185 = ssub.s32 %s27, %s34
      %s186 = sor.u32 %s184, %s185
      %p187 = scmp.eq.s32.totalorder %s186, 0
      %s189 = sadd.s32 %s188, 1
      %s190 = scalar_select %p187, %s188, %s189
      %p193 = pneg %p187
      %p194 = scmp.eq.s32.totalorder %s19, 1
      %p195 = por %p193, %p194
      %p196 = scmp.ne.s32.totalorder %s188, %s191
      %p197 = scmp.eq.s32.totalorder %s19, 0
      %p198 = por %p196, %p197
      %p199 = scmp.ne.s32.totalorder %s188, %s191
      %p200 = scmp.eq.s32.totalorder %s24, 1
      %p201 = por %p199, %p200
      %p202 = scmp.ne.s32.totalorder %s191, %s192
      %p203 = scmp.eq.s32.totalorder %s24, 0
      %p204 = por %p202, %p203
      %p205 = scmp.ne.s32.totalorder %s191, %s192
      %p206 = scmp.eq.s32.totalorder %s25, 1
      %p207 = por %p205, %p206
      %p209 = scmp.ne.s32.totalorder %s192, %s208
      %p210 = scmp.eq.s32.totalorder %s25, 0
      %p211 = por %p209, %p210
      %p212 = scmp.le.s32.totalorder 1, %s19
      %p213 = scmp.lt.s32.totalorder %s19, 3
      %p214 = pnand %p212, %p213
      %p215 = pneg %p214
      // Predicated region
      $region9: #{tpu_custom_call.1} parent=5 // pred_check
        _
      $region10: #{tpu_custom_call.1} parent=5 // pred_check_branch
        %217 = sbr.rel (%p214) target = $region12
      $region11: #{tpu_custom_call.1} parent=5 // pred_region
        %s218 = ssub.s32 %s19, 1
        // Predicated region
        $region13: #{tpu_custom_call.1} parent=11 // pred_check
          %p219 = pneg %p106
        $region14: #{tpu_custom_call.1} parent=11 // pred_check_branch
          %221 = sbr.rel (%p219) target = $region16
        $region15: #{tpu_custom_call.1} parent=11 // pred_region
          _
        $region16: #{tpu_custom_call.1} parent=11 // pred_fallthru
          _
        // Predicated region
        $region17: #{tpu_custom_call.1} parent=11 // pred_check
          %p222 = pneg %p127
        $region18: #{tpu_custom_call.1} parent=11 // pred_check_branch
          %224 = sbr.rel (%p222) target = $region20
        $region19: #{tpu_custom_call.1} parent=11 // pred_region
          _
        $region20: #{tpu_custom_call.1} parent=11 // pred_fallthru
          _
        // Predicated region
        $region21: #{tpu_custom_call.1} parent=11 // pred_check
          %p225 = pneg %p148
        $region22: #{tpu_custom_call.1} parent=11 // pred_check_branch
          %227 = sbr.rel (%p225) target = $region24
        $region23: #{tpu_custom_call.1} parent=11 // pred_region
          _
        $region24: #{tpu_custom_call.1} parent=11 // pred_fallthru
          _
      $region12: #{tpu_custom_call.1} parent=5 // pred_fallthru
        _
      %p228 = scmp.lt.s32.totalorder %s19, 2
      // Predicated region
      $region25: #{tpu_custom_call.1} parent=5 // pred_check
        %p229 = pneg %p228
      $region26: #{tpu_custom_call.1} parent=5 // pred_check_branch
        %231 = sbr.rel (%p229) target = $region28
      $region27: #{tpu_custom_call.1} parent=5 // pred_region
        // Predicated region
        $region29: #{tpu_custom_call.1} parent=27 // pred_check
          %p232 = pneg %p53
        $region30: #{tpu_custom_call.1} parent=27 // pred_check_branch
          %234 = sbr.rel (%p232) target = $region32
        $region31: #{tpu_custom_call.1} parent=27 // pred_region
          %s235 = smul.u32 2, %s27
          %p236 = scmp.lt.s32.totalorder %s26, 1
          %s237 = scalar_select %p236, %s26, 1
          %p238 = scmp.lt.s32.totalorder %s235, 1
          %s239 = scalar_select %p238, %s235, 1
          %s240 = smul.addr %s237, 4
          %s241 = sadd.s32 %s239, %s240
          %s242 = smul.addr %s241, 8
          %s243 = scalar_lea.vmem %s0, %s242
          %s244 = smul.u32 2, %s27
        $region32: #{tpu_custom_call.1} parent=27 // pred_fallthru
          _
        // Predicated region
        $region33: #{tpu_custom_call.1} parent=27 // pred_check
          %p245 = pneg %p79
        $region34: #{tpu_custom_call.1} parent=27 // pred_check_branch
          %247 = sbr.rel (%p245) target = $region36
        $region35: #{tpu_custom_call.1} parent=27 // pred_region
          %p248 = scmp.lt.s32.totalorder %s26, 1
          %s249 = scalar_select %p248, %s26, 1
          %s250 = smul.addr %s249, 4
          %s251 = smul.addr %s250, 8
          %s252 = scalar_lea.vmem %s1, %s251
        $region36: #{tpu_custom_call.1} parent=27 // pred_fallthru
          _
      $region28: #{tpu_custom_call.1} parent=5 // pred_fallthru
        _
      %p253 = scmp.le.s32.totalorder 1, %s19
      %p254 = scmp.lt.s32.totalorder %s19, 3
      %p255 = pnand %p253, %p254
      %p256 = pneg %p255
      // Predicated region
      $region37: #{tpu_custom_call.1} parent=5 // pred_check
        _
      $region38: #{tpu_custom_call.1} parent=5 // pred_check_branch
        %258 = sbr.rel (%p255) target = $region40
      $region39: #{tpu_custom_call.1} parent=5 // pred_region
        %s259 = ssub.s32 %s19, 1
        %s260 = smul.u32 2, %s29
        %p261 = scmp.lt.s32.totalorder %s28, 1
        %s262 = scalar_select %p261, %s28, 1
        %p263 = scmp.lt.s32.totalorder %s260, 1
        %s264 = scalar_select %p263, %s260, 1
        %s265 = smul.addr %s262, 4
        %s266 = sadd.s32 %s264, %s265
        %s267 = smul.addr %s266, 8
        %s268 = scalar_lea.vmem %s0, %s267
        %p269 = pneg %p59
        %p270 = pneg %p56
        %p271 = scmp.lt.s32.totalorder %s28, 1
        %s272 = scalar_select %p271, %s28, 1
        %s273 = smul.addr %s272, 4
        %s274 = smul.addr %s273, 8
        %s275 = scalar_lea.vmem %s1, %s274
        %p276 = pneg %p85
        %p277 = pneg %p82
        %p278 = pneg %p106
        %p279 = pneg %p103
        %p280 = pneg %p127
        %p281 = pneg %p124
        %p282 = pneg %p148
        %p283 = pneg %p145
        %p284 = pneg %p176
        %p285 = pneg %p173
        %s286 = sand.u32 %s163, 1
        %s287 = scalar_lea.sflag [#allocation3], %s286
        %s288 = sand.u32 %s163, 1
        %s289 = smul.addr %s288, 2
        %s290 = scalar_lea.vmem [#allocation2], %s289
        %p291 = pneg %p204
        %p292 = pneg %p201
        %s293 = sand.u32 %s191, 1
        %s294 = scalar_lea.sflag [#allocation5], %s293
        %s295 = sand.u32 %s191, 1
        %s296 = smul.addr %s295, 64
        %s297 = scalar_lea.vmem [#allocation4], %s296
        %s298 = smul.u32 2, %s29
        %p299 = scmp.lt.s32.totalorder %s28, 1
        %s300 = scalar_select %p299, %s28, 1
        %p301 = scmp.lt.s32.totalorder %s298, 1
        %s302 = scalar_select %p301, %s298, 1
        %s303 = smul.addr %s300, 4
        %s304 = sadd.s32 %s302, %s303
        %s305 = smul.addr %s304, 8
        %s306 = scalar_lea.vmem %s0, %s305
        %s307 = smul.u32 2, %s29
        %p308 = scmp.lt.s32.totalorder %s28, 1
        %s309 = scalar_select %p308, %s28, 1
        %s310 = smul.addr %s309, 4
        %s311 = smul.addr %s310, 8
        %s312 = scalar_lea.vmem %s1, %s311
        %s313 = smul.u32 2, %s29
        %s314 = smul.u32 2, %s29
        %v315 = vld [vmem:[%s306] sm:$0xff]
        %v316 = vld [vmem:[%s306 + $0x8] sm:$0xff]
        %v317 = vld [vmem:[%s306 + $0x10] sm:$0xff]
        %v318 = vld [vmem:[%s306 + $0x18] sm:$0xff]
        %v319 = vld [vmem:[%s2] sm:$0xff]
        %v320 = vld [vmem:[%s2 + $0x8] sm:$0xff]
        %v321 = vld [vmem:[%s2 + $0x10] sm:$0xff]
        %v322 = vld [vmem:[%s2 + $0x18] sm:$0xff]
        %v323 = vld [vmem:[%s2 + $0x20] sm:$0xff]
        %v324 = vld [vmem:[%s2 + $0x28] sm:$0xff]
        %v325 = vld [vmem:[%s2 + $0x30] sm:$0xff]
        %v326 = vld [vmem:[%s2 + $0x38] sm:$0xff]
        %v327 = vld [vmem:[%s3] sm:$0xff]
        %v328 = vld [vmem:[%s3 + $0x8] sm:$0xff]
        %v329 = vld [vmem:[%s3 + $0x10] sm:$0xff]
        %v330 = vld [vmem:[%s3 + $0x18] sm:$0xff]
        %v331 = vld [vmem:[%s3 + $0x20] sm:$0xff]
        %v332 = vld [vmem:[%s3 + $0x28] sm:$0xff]
        %v333 = vld [vmem:[%s3 + $0x30] sm:$0xff]
        %v334 = vld [vmem:[%s3 + $0x38] sm:$0xff]
        %336 = vset.pattern.permute.xlu0 0
        %337 = vperm.xlu0 %336, %v327
        %v338 = vpop.permute.xlu0 %337
        %341 = vset.pattern.permute.xlu0 0
        %342 = vperm.xlu0 %341, %v328
        %v343 = vpop.permute.xlu0 %342
        %346 = vset.pattern.permute.xlu0 0
        %347 = vperm.xlu0 %346, %v329
        %v348 = vpop.permute.xlu0 %347
        %351 = vset.pattern.permute.xlu0 0
        %352 = vperm.xlu0 %351, %v330
        %v353 = vpop.permute.xlu0 %352
        %356 = vset.pattern.permute.xlu0 0
        %357 = vperm.xlu0 %356, %v331
        %v358 = vpop.permute.xlu0 %357
        %361 = vset.pattern.permute.xlu0 0
        %362 = vperm.xlu0 %361, %v332
        %v363 = vpop.permute.xlu0 %362
        %366 = vset.pattern.permute.xlu0 0
        %367 = vperm.xlu0 %366, %v333
        %v368 = vpop.permute.xlu0 %367
        %371 = vset.pattern.permute.xlu0 0
        %372 = vperm.xlu0 %371, %v334
        %v373 = vpop.permute.xlu0 %372
        %vm375 = vcmask 130048
        %v377 = vsel %vm375, %v319, 0
        %v380 = vsel %vm375, %v320, 0
        %v383 = vsel %vm375, %v321, 0
        %v386 = vsel %vm375, %v322, 0
        %v389 = vsel %vm375, %v323, 0
        %v392 = vsel %vm375, %v324, 0
        %v395 = vsel %vm375, %v325, 0
        %v398 = vsel %vm375, %v326, 0
        %400 = vmatprep.subr.mxu0 %v316
        %401 = vmatpush1.msra.mxu0 %v315
        %402 = vmatprep.subr.mxu0 %v318
        %403 = vmatpush1.msra.mxu0 %v317
        %404 = vmatprep.subr.mxu0 0.0
        %405 = vmatpush1.msra.mxu0 0.0
        %406 = vmatprep.subr.mxu0 0.0
        %407 = vmatpush1.msra.mxu0 0.0
        %408 = vmatprep.subr.mxu0 0.0
        %409 = vmatpush1.msra.mxu0 0.0
        %410 = vmatprep.subr.mxu0 0.0
        %411 = vmatpush1.msra.mxu0 0.0
        %412 = vmatprep.subr.mxu0 0.0
        %413 = vmatpush1.msra.mxu0 0.0
        %414 = vmatprep.subr.mxu0 0.0
        %415 = vmatpush1.msra.mxu0 0.0
        %416 = vmatprep.subr.mxu0 0.0
        %417 = vmatpush1.msra.mxu0 0.0
        %418 = vmatprep.subr.mxu0 0.0
        %419 = vmatpush1.msra.mxu0 0.0
        %420 = vmatprep.subr.mxu0 0.0
        %421 = vmatpush1.msra.mxu0 0.0
        %422 = vmatprep.subr.mxu0 0.0
        %423 = vmatpush1.msra.mxu0 0.0
        %424 = vmatprep.subr.mxu0 0.0
        %425 = vmatpush1.msra.mxu0 0.0
        %426 = vmatprep.subr.mxu0 0.0
        %427 = vmatpush1.msra.mxu0 0.0
        %428 = vmatprep.subr.mxu0 0.0
        %429 = vmatpush1.msra.mxu0 0.0
        %430 = vmatprep.subr.mxu0 0.0
        %431 = vmatpush1.msra.mxu0 0.0
        %432 = vmatprep.subr.mxu0 0.0
        %433 = vmatpush1.msra.mxu0 0.0
        %434 = vmatprep.subr.mxu0 0.0
        %435 = vmatpush1.msra.mxu0 0.0
        %436 = vmatprep.subr.mxu0 0.0
        %437 = vmatpush1.msra.mxu0 0.0
        %438 = vmatprep.subr.mxu0 0.0
        %439 = vmatpush1.msra.mxu0 0.0
        %440 = vmatprep.subr.mxu0 0.0
        %441 = vmatpush1.msra.mxu0 0.0
        %442 = vmatprep.subr.mxu0 0.0
        %443 = vmatpush1.msra.mxu0 0.0
        %444 = vmatprep.subr.mxu0 0.0
        %445 = vmatpush1.msra.mxu0 0.0
        %446 = vmatprep.subr.mxu0 0.0
        %447 = vmatpush1.msra.mxu0 0.0
        %448 = vmatprep.subr.mxu0 0.0
        %449 = vmatpush1.msra.mxu0 0.0
        %450 = vmatprep.subr.mxu0 0.0
        %451 = vmatpush1.msra.mxu0 0.0
        %452 = vmatprep.subr.mxu0 0.0
        %453 = vmatpush1.msra.mxu0 0.0
        %454 = vmatprep.subr.mxu0 0.0
        %455 = vmatpush1.msra.mxu0 0.0
        %456 = vmatprep.subr.mxu0 0.0
        %457 = vmatpush1.msra.mxu0 0.0
        %458 = vmatprep.subr.mxu0 0.0
        %459 = vmatpush1.msra.mxu0 0.0
        %460 = vmatprep.subr.mxu0 0.0
        %461 = vmatpush1.msra.mxu0 0.0
        %462 = vmatprep.subr.mxu0 0.0
        %463 = vmatpush1.msra.mxu0 0.0
        %464 = vmatprep.mubr.f32.mxu0 0.0
        %465 = vmatmul.mubr.f32.gmra.mrb[0].mxu0 %v377
        %v466 = vpop.f32.mrb[0].mxu0
        %v467 = vadd.f32 %v338, %v466
        %v468 = vpop.f32.mrb[0].mxu0
        %v469 = vadd.f32 %v338, %v468
        %470 = vmatprep.mubr.f32.mxu0 0.0
        %471 = vmatmul.mubr.f32.gmra.mrb[0].mxu0 %v380
        %v472 = vpop.f32.mrb[0].mxu0
        %v473 = vadd.f32 %v343, %v472
        %v474 = vpop.f32.mrb[0].mxu0
        %v475 = vadd.f32 %v343, %v474
        %476 = vmatprep.mubr.f32.mxu0 0.0
        %477 = vmatmul.mubr.f32.gmra.mrb[0].mxu0 %v383
        %v478 = vpop.f32.mrb[0].mxu0
        %v479 = vadd.f32 %v348, %v478
        %v480 = vpop.f32.mrb[0].mxu0
        %v481 = vadd.f32 %v348, %v480
        %482 = vmatprep.mubr.f32.mxu0 0.0
        %483 = vmatmul.mubr.f32.gmra.mrb[0].mxu0 %v386
        %v484 = vpop.f32.mrb[0].mxu0
        %v485 = vadd.f32 %v353, %v484
        %v486 = vpop.f32.mrb[0].mxu0
        %v487 = vadd.f32 %v353, %v486
        %488 = vmatprep.mubr.f32.mxu0 0.0
        %489 = vmatmul.mubr.f32.gmra.mrb[0].mxu0 %v389
        %v490 = vpop.f32.mrb[0].mxu0
        %v491 = vadd.f32 %v358, %v490
        %v492 = vpop.f32.mrb[0].mxu0
        %v493 = vadd.f32 %v358, %v492
        %494 = vmatprep.mubr.f32.mxu0 0.0
        %495 = vmatmul.mubr.f32.gmra.mrb[0].mxu0 %v392
        %v496 = vpop.f32.mrb[0].mxu0
        %v497 = vadd.f32 %v363, %v496
        %v498 = vpop.f32.mrb[0].mxu0
        %v499 = vadd.f32 %v363, %v498
        %500 = vmatprep.mubr.f32.mxu0 0.0
        %501 = vmatmul.mubr.f32.gmra.mrb[0].mxu0 %v395
        %v502 = vpop.f32.mrb[0].mxu0
        %v503 = vadd.f32 %v368, %v502
        %v504 = vpop.f32.mrb[0].mxu0
        %v505 = vadd.f32 %v368, %v504
        %506 = vmatprep.mubr.f32.mxu0 0.0
        %507 = vmatmul.mubr.f32.gmra.mrb[0].mxu0 %v398
        %v508 = vpop.f32.mrb[0].mxu0
        %v509 = vadd.f32 %v373, %v508
        %v510 = vpop.f32.mrb[0].mxu0
        %v511 = vadd.f32 %v373, %v510
        %512 = vdwg.mxu0
        %v513 = vld [vmem:[%s312] sm:$0xff]
        %v514 = vld [vmem:[%s312 + $0x8] sm:$0xff]
        %v515 = vld [vmem:[%s312 + $0x10] sm:$0xff]
        %v516 = vld [vmem:[%s312 + $0x18] sm:$0xff]
        %518 = vset.pattern.permute.xlu0 0
        %519 = vperm.xlu0 %518, %v513
        %v520 = vpop.permute.xlu0 %519
        %523 = vset.pattern.permute.xlu0 0
        %524 = vperm.xlu0 %523, %v514
        %v525 = vpop.permute.xlu0 %524
        %528 = vset.pattern.permute.xlu0 0
        %529 = vperm.xlu0 %528, %v515
        %v530 = vpop.permute.xlu0 %529
        %533 = vset.pattern.permute.xlu0 0
        %534 = vperm.xlu0 %533, %v516
        %v535 = vpop.permute.xlu0 %534
        %v537 = vmul.f32 %v467, %v520
        %v538 = vmul.f32 %v469, %v520
        %v539 = vmul.f32 %v473, %v525
        %v540 = vmul.f32 %v475, %v525
        %v541 = vmul.f32 %v479, %v530
        %v542 = vmul.f32 %v481, %v530
        %v543 = vmul.f32 %v485, %v535
        %v544 = vmul.f32 %v487, %v535
        %v545 = vld [vmem:[%s4] sm:$0xff]
        %v546 = vld [vmem:[%s4 + $0x8] sm:$0xff]
        %v547 = vld [vmem:[%s4 + $0x10] sm:$0xff]
        %v548 = vld [vmem:[%s4 + $0x18] sm:$0xff]
        %v549 = vld [vmem:[%s4 + $0x20] sm:$0x1]
        %vm550 = vcmask 261120
        %v552 = vsel %vm550, %v545, 0
        %v555 = vsel %vm550, %v546, 0
        %v558 = vsel %vm550, %v547, 0
        %v561 = vsel %vm550, %v548, 0
        %v564 = vsel %vm550, %v549, 0
        %566 = vmatprep.subr.mxu0 %v538
        %567 = vmatpush1.msra.mxu0 %v537
        %568 = vmatprep.subr.mxu0 %v540
        %569 = vmatpush1.msra.mxu0 %v539
        %570 = vmatprep.subr.mxu0 %v542
        %571 = vmatpush1.msra.mxu0 %v541
        %572 = vmatprep.subr.mxu0 %v544
        %573 = vmatpush1.msra.mxu0 %v543
        %574 = vmatprep.subr.mxu0 0.0
        %575 = vmatpush1.msra.mxu0 0.0
        %576 = vmatprep.subr.mxu0 0.0
        %577 = vmatpush1.msra.mxu0 0.0
        %578 = vmatprep.subr.mxu0 0.0
        %579 = vmatpush1.msra.mxu0 0.0
        %580 = vmatprep.subr.mxu0 0.0
        %581 = vmatpush1.msra.mxu0 0.0
        %582 = vmatprep.subr.mxu0 0.0
        %583 = vmatpush1.msra.mxu0 0.0
        %584 = vmatprep.subr.mxu0 0.0
        %585 = vmatpush1.msra.mxu0 0.0
        %586 = vmatprep.subr.mxu0 0.0
        %587 = vmatpush1.msra.mxu0 0.0
        %588 = vmatprep.subr.mxu0 0.0
        %589 = vmatpush1.msra.mxu0 0.0
        %590 = vmatprep.subr.mxu0 0.0
        %591 = vmatpush1.msra.mxu0 0.0
        %592 = vmatprep.subr.mxu0 0.0
        %593 = vmatpush1.msra.mxu0 0.0
        %594 = vmatprep.subr.mxu0 0.0
        %595 = vmatpush1.msra.mxu0 0.0
        %596 = vmatprep.subr.mxu0 0.0
        %597 = vmatpush1.msra.mxu0 0.0
        %598 = vmatprep.subr.mxu0 0.0
        %599 = vmatpush1.msra.mxu0 0.0
        %600 = vmatprep.subr.mxu0 0.0
        %601 = vmatpush1.msra.mxu0 0.0
        %602 = vmatprep.subr.mxu0 0.0
        %603 = vmatpush1.msra.mxu0 0.0
        %604 = vmatprep.subr.mxu0 0.0
        %605 = vmatpush1.msra.mxu0 0.0
        %606 = vmatprep.subr.mxu0 0.0
        %607 = vmatpush1.msra.mxu0 0.0
        %608 = vmatprep.subr.mxu0 0.0
        %609 = vmatpush1.msra.mxu0 0.0
        %610 = vmatprep.subr.mxu0 0.0
        %611 = vmatpush1.msra.mxu0 0.0
        %612 = vmatprep.subr.mxu0 0.0
        %613 = vmatpush1.msra.mxu0 0.0
        %614 = vmatprep.subr.mxu0 0.0
        %615 = vmatpush1.msra.mxu0 0.0
        %616 = vmatprep.subr.mxu0 0.0
        %617 = vmatpush1.msra.mxu0 0.0
        %618 = vmatprep.subr.mxu0 0.0
        %619 = vmatpush1.msra.mxu0 0.0
        %620 = vmatprep.subr.mxu0 0.0
        %621 = vmatpush1.msra.mxu0 0.0
        %622 = vmatprep.subr.mxu0 0.0
        %623 = vmatpush1.msra.mxu0 0.0
        %624 = vmatprep.subr.mxu0 0.0
        %625 = vmatpush1.msra.mxu0 0.0
        %626 = vmatprep.subr.mxu0 0.0
        %627 = vmatpush1.msra.mxu0 0.0
        %628 = vmatprep.subr.mxu0 0.0
        %629 = vmatpush1.msra.mxu0 0.0
        %630 = vmatprep.mubr.f32.mxu0 0.0
        %631 = vmatmul.mubr.f32.gmra.mrb[0].mxu0 %v552
        %v632 = vpop.f32.mrb[0].mxu0
        %v633 = vadd.f32 0.0, %v632
        %v634 = vpop.f32.mrb[0].mxu0
        %v635 = vadd.f32 0.0, %v634
        %636 = vmatprep.mubr.f32.mxu0 0.0
        %637 = vmatmul.mubr.f32.gmra.mrb[0].mxu0 %v555
        %v638 = vpop.f32.mrb[0].mxu0
        %v639 = vadd.f32 0.0, %v638
        %v640 = vpop.f32.mrb[0].mxu0
        %v641 = vadd.f32 0.0, %v640
        %642 = vmatprep.mubr.f32.mxu0 0.0
        %643 = vmatmul.mubr.f32.gmra.mrb[0].mxu0 %v558
        %v644 = vpop.f32.mrb[0].mxu0
        %v645 = vadd.f32 0.0, %v644
        %v646 = vpop.f32.mrb[0].mxu0
        %v647 = vadd.f32 0.0, %v646
        %648 = vmatprep.mubr.f32.mxu0 0.0
        %649 = vmatmul.mubr.f32.gmra.mrb[0].mxu0 %v561
        %v650 = vpop.f32.mrb[0].mxu0
        %v651 = vadd.f32 0.0, %v650
        %v652 = vpop.f32.mrb[0].mxu0
        %v653 = vadd.f32 0.0, %v652
        %654 = vmatprep.mubr.f32.mxu0 0.0
        %655 = vmatmul.mubr.f32.gmra.mrb[0].mxu0 %v564
        %v656 = vpop.f32.mrb[0].mxu0
        %v657 = vadd.f32 0.0, %v656
        %v658 = vpop.f32.mrb[0].mxu0
        %v659 = vadd.f32 0.0, %v658
        %660 = vdwg.mxu0
        %v663 = vcombine.low %v657, %v659
        %v665 = vunpack.c.l.s4 1966171168
        %v666 = vunpack.c.0.s8 %v665
        %v667 = vlaneseq
        %v668 = vshrl.u32 %v667, 7
        %v669 = vsub.s32 %v666, %v668
        %v670 = vrot.slane %v663, %v669
        %v672 = vunpack.c.l.s4 1966171168
        %v673 = vunpack.c.0.s8 %v672
        %v674 = vlaneseq
        %v675 = vshrl.u32 %v674, 7
        %v676 = vsub.s32 %v673, %v675
        %v677 = vrot.slane %v670, %v676
        %v679 = vlaneseq
        %vm680 = vcmp.ge.s32.totalorder %v679, 0
        %vm681 = vcmp.lt.s32.totalorder %v679, 256
        %vm682 = vmand %vm680, %vm681
        %683 = vst.msk [vmem:[%s290] sm:$0x3] %vm682, %v677
        %v684 = vxor.u32 %v633, 2147483648
        %v685 = vxor.u32 %v635, 2147483648
        %v686 = vxor.u32 %v639, 2147483648
        %v687 = vxor.u32 %v641, 2147483648
        %v688 = vxor.u32 %v645, 2147483648
        %v689 = vxor.u32 %v647, 2147483648
        %v690 = vxor.u32 %v651, 2147483648
        %v691 = vxor.u32 %v653, 2147483648
        %v692 = vmul.f32 %v684, 1.442695
        %v693 = vpow.pop %v692
        %v694 = vmul.f32 %v685, 1.442695
        %v695 = vpow.pop %v694
        %v696 = vmul.f32 %v686, 1.442695
        %v697 = vpow.pop %v696
        %v698 = vmul.f32 %v687, 1.442695
        %v699 = vpow.pop %v698
        %v700 = vmul.f32 %v688, 1.442695
        %v701 = vpow.pop %v700
        %v702 = vmul.f32 %v689, 1.442695
        %v703 = vpow.pop %v702
        %v704 = vmul.f32 %v690, 1.442695
        %v705 = vpow.pop %v704
        %v706 = vmul.f32 %v691, 1.442695
        %v707 = vpow.pop %v706
        %v708 = vadd.f32 %v693, 1.0
        %v709 = vadd.f32 %v695, 1.0
        %v710 = vadd.f32 %v697, 1.0
        %v711 = vadd.f32 %v699, 1.0
        %v712 = vadd.f32 %v701, 1.0
        %v713 = vadd.f32 %v703, 1.0
        %v714 = vadd.f32 %v705, 1.0
        %v715 = vadd.f32 %v707, 1.0
        %v716 = vrcp.pop %v708
        %v717 = vmul.f32 1.0, %v716
        %v718 = vrcp.pop %v709
        %v719 = vmul.f32 1.0, %v718
        %v720 = vrcp.pop %v710
        %v721 = vmul.f32 1.0, %v720
        %v722 = vrcp.pop %v711
        %v723 = vmul.f32 1.0, %v722
        %v724 = vrcp.pop %v712
        %v725 = vmul.f32 1.0, %v724
        %v726 = vrcp.pop %v713
        %v727 = vmul.f32 1.0, %v726
        %v728 = vrcp.pop %v714
        %v729 = vmul.f32 1.0, %v728
        %v730 = vrcp.pop %v715
        %v731 = vmul.f32 1.0, %v730
        %v732 = vmul.f32 %v491, %v717
        %v733 = vmul.f32 %v493, %v719
        %v734 = vmul.f32 %v497, %v721
        %v735 = vmul.f32 %v499, %v723
        %v736 = vmul.f32 %v503, %v725
        %v737 = vmul.f32 %v505, %v727
        %v738 = vmul.f32 %v509, %v729
        %v739 = vmul.f32 %v511, %v731
        %740 = vst [vmem:[%s297] sm:$0xff] %v732
        %741 = vst [vmem:[%s297 + $0x8] sm:$0xff] %v733
        %742 = vst [vmem:[%s297 + $0x10] sm:$0xff] %v734
        %743 = vst [vmem:[%s297 + $0x18] sm:$0xff] %v735
        %744 = vst [vmem:[%s297 + $0x20] sm:$0xff] %v736
        %745 = vst [vmem:[%s297 + $0x28] sm:$0xff] %v737
        %746 = vst [vmem:[%s297 + $0x30] sm:$0xff] %v738
        %747 = vst [vmem:[%s297 + $0x38] sm:$0xff] %v739
        %s748 = sand.u32 %s163, 1
        %s749 = scalar_lea.sflag [#allocation3], %s748
        %s750 = sand.u32 %s163, 1
        %s751 = smul.addr %s750, 2
        %s752 = scalar_lea.vmem [#allocation2], %s751
        %s753 = sand.u32 %s191, 1
        %s754 = scalar_lea.sflag [#allocation5], %s753
        %s755 = sand.u32 %s191, 1
        %s756 = smul.addr %s755, 64
        %s757 = scalar_lea.vmem [#allocation4], %s756
        // Predicated region
        $region41: #{tpu_custom_call.1} parent=39 // pred_check
          %p758 = pneg %p173
        $region42: #{tpu_custom_call.1} parent=39 // pred_check_branch
          %760 = sbr.rel (%p758) target = $region44
        $region43: #{tpu_custom_call.1} parent=39 // pred_region
          %s761 = smul.u32 2, %s29
          %s763 = ssub.s32 32, 32
          %764 = vsyncadd %s749, %s763
          %s765 = smul.addr %s28, 2
          %s766 = sadd.s32 %s761, %s765
          %s767 = smul.addr %s766, 16
          %s768 = scalar_lea.hbm %s5, %s767
          %s770 = sshll.u32 %s752, 4
          %s771 = int_to_ptr.vmem [resolvable:$true] %s770
          %773 = dma.vmem_to_hbm [thread:$0]  %s771, 32, %s768, %s749
        $region44: #{tpu_custom_call.1} parent=39 // pred_fallthru
          _
        // Predicated region
        $region45: #{tpu_custom_call.1} parent=39 // pred_check
          %p774 = pneg %p201
        $region46: #{tpu_custom_call.1} parent=39 // pred_check_branch
          %776 = sbr.rel (%p774) target = $region48
        $region47: #{tpu_custom_call.1} parent=39 // pred_region
          %s777 = smul.u32 2, %s29
          %s779 = ssub.s32 1024, 1024
          %780 = vsyncadd %s754, %s779
          %s781 = smul.addr %s28, 8
          %s782 = sadd.s32 %s777, %s781
          %s783 = smul.addr %s782, 128
          %s784 = scalar_lea.hbm %s6, %s783
          %s785 = sshll.u32 %s757, 4
          %s786 = int_to_ptr.vmem [resolvable:$true] %s785
          %791 = dma.vmem_to_hbm [thread:$0]  %s786, 1024, %s784, %s754, 256, 256, 16
        $region48: #{tpu_custom_call.1} parent=39 // pred_fallthru
          _
      $region40: #{tpu_custom_call.1} parent=5 // pred_fallthru
        _
      %p792 = scmp.le.s32.totalorder 2, %s19
      // Predicated region
      $region49: #{tpu_custom_call.1} parent=5 // pred_check
        %p793 = pneg %p792
      $region50: #{tpu_custom_call.1} parent=5 // pred_check_branch
        %795 = sbr.rel (%p793) target = $region52
      $region51: #{tpu_custom_call.1} parent=5 // pred_region
        %s796 = ssub.s32 %s19, 2
        // Predicated region
        $region53: #{tpu_custom_call.1} parent=51 // pred_check
          %p797 = pneg %p179
        $region54: #{tpu_custom_call.1} parent=51 // pred_check_branch
          %799 = sbr.rel (%p797) target = $region56
        $region55: #{tpu_custom_call.1} parent=51 // pred_region
          %s800 = sand.u32 %s164, 1
          %s801 = scalar_lea.sflag [#allocation3], %s800
          %s802 = sand.u32 %s164, 1
          %s803 = smul.addr %s802, 2
          %s804 = scalar_lea.vmem [#allocation2], %s803
          %805 = dma.done %s801, 32
        $region56: #{tpu_custom_call.1} parent=51 // pred_fallthru
          _
        // Predicated region
        $region57: #{tpu_custom_call.1} parent=51 // pred_check
          %p806 = pneg %p207
        $region58: #{tpu_custom_call.1} parent=51 // pred_check_branch
          %808 = sbr.rel (%p806) target = $region60
        $region59: #{tpu_custom_call.1} parent=51 // pred_region
          %s809 = sand.u32 %s192, 1
          %s810 = scalar_lea.sflag [#allocation5], %s809
          %s811 = sand.u32 %s192, 1
          %s812 = smul.addr %s811, 64
          %s813 = scalar_lea.vmem [#allocation4], %s812
          %814 = dma.done %s810, 1024
        $region60: #{tpu_custom_call.1} parent=51 // pred_fallthru
          _
      $region52: #{tpu_custom_call.1} parent=5 // pred_fallthru
        _
    $region6: #{tpu_custom_call.1} parent=1 // loop_footer
      %s23 = sadd.s32 1, %s19
    $region7: #{tpu_custom_call.1} parent=1 // loop_footer_branch
      %18 = sbr.rel target = $region3
    $region8: #{tpu_custom_call.1} parent=1 // loop_exit
      _
    %815 = vsyncpa [#allocation3], 1
    %s816 = scalar_lea.sflag [#allocation3], 1
    %817 = vsyncpa %s816, 1
    %818 = vsyncpa [#allocation5], 1
    %s819 = scalar_lea.sflag [#allocation5], 1
    %820 = vsyncpa %s819, 1

</llo_original>
